<compile_context>
chip_gen: v6e
topology: v6e:2x2x1
jax: 0.10.0
libtpu: 0.0.40
codegen_flags: <defaults>
</compile_context>

<pallas_src>
import jax
import jax.numpy as jnp
import numpy as np
from jax import lax
from jax.experimental import pallas as pl
from jax.experimental.pallas import tpu as pltpu


_GATE_ORDER = {"f": ("z", "f"), "fo": ("z", "f", "o"), "ifo": ("z", "f", "o", "i")}


# -------------------- fused gate + recurrence kernel (one direction per grid step) ----

def make_qrnn_layer_kernel(T, Bp, H, pooling):
    """T: timesteps, Bp: padded batch (multiple of 8), H: hidden, pooling: 'f'|'fo'|'ifo'."""
    has_o = pooling in ("fo", "ifo")
    unroll = min(T, 8)

    def kernel(xc_ref, wg_ref, bg_ref, out_ref, f_s, m_s):
        # xc_ref : (1, T*Bp, K*C) bf16   time-major im2col slab for this direction
        # wg_ref : (1, K*C, G*H) bf16    packed [z|f|(o)|(i)] conv weights, taps folded into rows
        # bg_ref : (1, 1, G*H)   f32     packed biases
        # out_ref: (1, T*Bp, H)  f32     pooled output (time-major rows)
        # f_s/m_s: (T*Bp, H)     f32     VMEM scratch for the forget gate / mix term
        pre = jnp.dot(xc_ref[0], wg_ref[0],
                      preferred_element_type=jnp.float32) + bg_ref[0]   # (T*Bp, G*H)

        sig = jax.nn.sigmoid(pre)              # one full-width EUP pass (lanes we need + z lanes)
        z = jnp.tanh(pre[:, 0:H])
        f = sig[:, H:2 * H]                    # eval mode: zoneout is identity
        if pooling == "ifo":
            mix = sig[:, 3 * H:4 * H] * z      # i * z
        else:                                  # 'f' and 'fo' pooling
            mix = (1.0 - f) * z

        f_s[...] = f
        m_s[...] = mix

        # Serial recurrence over time, whole (Bp, H) batch block per step; rows are
        # time-major so each step is a tile-aligned (Bp multiple of 8) sublane window.
        def step(t, c):
            r = t * Bp
            c = f_s[pl.ds(r, Bp), :] * c + m_s[pl.ds(r, Bp), :]
            out_ref[0, pl.ds(r, Bp), :] = c
            return c

        lax.fori_loop(0, T, step, jnp.zeros((Bp, H), jnp.float32), unroll=unroll)

        if has_o:
            out_ref[0] = out_ref[0] * sig[:, 2 * H:3 * H]   # o-gate, one vectorized pass

    return kernel


# -------------------- one QRNNLayer (all directions) via a single pallas_call ---------

def qrnn_layer_pallas(x_btc, dir_params, K, H, pooling):
    """One QRNNLayer forward for all directions.

    x_btc: (B, T, C) f32.  dir_params: list (len 1 or 2) of per-direction param dicts.
    Returns a list of per-direction outputs, each (B, T, H) f32 (reverse direction is in
    flipped-time order, matching the PyTorch module which does not flip it back).
    """
    B, T, C = x_btc.shape
    ndir = len(dir_params)
    gates = _GATE_ORDER[pooling]
    GH = len(gates) * H
    KC = K * C
    Bp = ((B + 7) // 8) * 8                     # pad batch to a sublane-tile multiple

    # Pack only the gate convs this pooling mode uses; taps folded into contraction rows.
    wg = jnp.stack(
        [jnp.concatenate([p["w" + g] for g in gates], axis=-1).reshape(KC, GH)
         for p in dir_params], axis=0).astype(jnp.bfloat16)             # (ndir, KC, GH)
    bg = jnp.stack(
        [jnp.concatenate([p["b" + g] for g in gates], axis=-1)
         for p in dir_params], axis=0).astype(jnp.float32)              # (ndir, 1, GH)

    def im2col(xb):
        # Causal left padding (kernel_size - 1 zeros) then window concat -> (T, Bp, KC) rows.
        xp = jnp.pad(xb, ((0, 0), (K - 1, 0), (0, 0)))                  # (B, T+K-1, C)
        cols = jnp.concatenate([xp[:, k:k + T, :] for k in range(K)], axis=-1)  # (B, T, KC)
        cols = jnp.transpose(cols, (1, 0, 2))                           # time-major (T, B, KC)
        if Bp != B:
            cols = jnp.pad(cols, ((0, 0), (0, Bp - B), (0, 0)))
        return cols.reshape(T * Bp, KC)

    xs = [x_btc]
    if ndir == 2:
        xs.append(jnp.flip(x_btc, axis=1))      # reverse direction flips time (not flipped back)
    xcol = jnp.stack([im2col(xd) for xd in xs], axis=0).astype(jnp.bfloat16)  # (ndir, T*Bp, KC)

    out = pl.pallas_call(
        make_qrnn_layer_kernel(T, Bp, H, pooling),
        grid=(ndir,),
        in_specs=[
            pl.BlockSpec((1, T * Bp, KC), lambda d: (d, 0, 0)),
            pl.BlockSpec((1, KC, GH), lambda d: (d, 0, 0)),
            pl.BlockSpec((1, 1, GH), lambda d: (d, 0, 0)),
        ],
        out_specs=pl.BlockSpec((1, T * Bp, H), lambda d: (d, 0, 0)),
        out_shape=jax.ShapeDtypeStruct((ndir, T * Bp, H), jnp.float32),
        scratch_shapes=[pltpu.VMEM((T * Bp, H), jnp.float32)] * 2,
        compiler_params=pltpu.CompilerParams(
            dimension_semantics=("parallel",),
            vmem_limit_bytes=32 * 1024 * 1024),
    )(xcol, wg, bg)

    out = out.reshape(ndir, T, Bp, H)[:, :, :B, :]          # drop batch padding
    out = jnp.transpose(out, (0, 2, 1, 3))                  # (ndir, B, T, H)
    return [out[d] for d in range(ndir)]


# -------------------- pure-JAX reference for one QRNNLayer ----------------------------

def _qrnn_dir_ref(x_btc, p, K, H, pooling):
    B, T, C = x_btc.shape
    xp = jnp.pad(x_btc, ((0, 0), (K - 1, 0), (0, 0)))

    def conv(w, b):
        acc = jnp.zeros((B, T, H), jnp.float32) + b.reshape(1, 1, H)
        for k in range(K):
            acc = acc + jnp.einsum("btc,ch->bth", xp[:, k:k + T, :], w[k])
        return acc

    z = jnp.tanh(conv(p["wz"], p["bz"]))
    f = jax.nn.sigmoid(conv(p["wf"], p["bf"]))
    if pooling == "ifo":
        i = jax.nn.sigmoid(conv(p["wi"], p["bi"]))
        mix = i * z
    else:
        mix = (1.0 - f) * z

    def step(c, fm):
        f_t, m_t = fm
        c = f_t * c + m_t
        return c, c

    f_tm = jnp.transpose(f, (1, 0, 2))
    m_tm = jnp.transpose(mix, (1, 0, 2))
    _, cs = jax.lax.scan(step, jnp.zeros((B, H), jnp.float32), (f_tm, m_tm))
    cs = jnp.transpose(cs, (1, 0, 2))                        # (B, T, H)
    if pooling in ("fo", "ifo"):
        o = jax.nn.sigmoid(conv(p["wo"], p["bo"]))
        return o * cs
    return cs


def qrnn_layer_ref(x_btc, dir_params, K, H, pooling):
    return [_qrnn_dir_ref(jnp.flip(x_btc, axis=1) if d == 1 else x_btc, p, K, H, pooling)
            for d, p in enumerate(dir_params)]


# -------------------- QRNN (multi-layer, bi-directional) forward ----------------------

def qrnn_forward(x, params, cfg, layer_fn):
    # x: (T, B, input_size) if not batch_first else (B, T, input_size)
    x_btc = x if cfg["batch_first"] else jnp.transpose(x, (1, 0, 2))
    B, T, _ = x_btc.shape
    # Faithful to the PyTorch code: lengths is filled with (timesteps - 1) and the
    # forward-direction "last" state is taken at index lengths - 1 == T - 2.
    t_last_fwd = (T - 1) - 1
    num_dirs = 2 if cfg["bidirectional"] else 1
    total_modules = cfg["num_layers"] * num_dirs             # == len(self.layers) in PyTorch
    H = cfg["hidden_size"]

    cur = x_btc
    last_hidden = []
    for layer in range(cfg["num_layers"]):
        K = cfg["first_kernel_size"] if layer == 0 else cfg["kernel_size"]
        names = ["layer_{}".format(layer) + ("_reverse" if d == 1 else "")
                 for d in range(num_dirs)]
        outs = layer_fn(cur, [params[n] for n in names], K, H, cfg["pooling"])
        lasts = [outs[d][:, (0 if d == 1 else t_last_fwd), :] for d in range(num_dirs)]
        last_hidden.append(jnp.concatenate(lasts, axis=-1))   # (B, H*dirs)
        out_cat = jnp.concatenate(outs, axis=-1)              # (B, T, H*dirs)
        if cfg["dense"] and layer != total_modules - 1:
            cur = jnp.concatenate([cur, out_cat], axis=-1)
        else:
            cur = out_cat

    output = cur if cfg["batch_first"] else jnp.transpose(cur, (1, 0, 2))
    h_n = jnp.stack(last_hidden, axis=0)                      # (num_layers, B, H*dirs)
    return output, h_n


# -------------------- deterministic parameter init ------------------------------------

def init_params(key, cfg):
    num_dirs = 2 if cfg["bidirectional"] else 1
    params = {}
    cur = cfg["input_size"]
    H = cfg["hidden_size"]
    for layer in range(cfg["num_layers"]):
        K = cfg["first_kernel_size"] if layer == 0 else cfg["kernel_size"]
        for direction in range(num_dirs):
            name = "layer_{}".format(layer) + ("_reverse" if direction == 1 else "")
            bound = 1.0 / np.sqrt(cur * K)                    # PyTorch Conv1d default init bound
            p = {}
            for g in ("z", "f", "o", "i"):
                key, k1, k2 = jax.random.split(key, 3)
                p["w" + g] = jax.random.uniform(k1, (K, cur, H), jnp.float32, -bound, bound)
                p["b" + g] = jax.random.uniform(k2, (1, H), jnp.float32, -bound, bound)
            params[name] = p
        if cfg["dense"]:
            cur += H * num_dirs
        else:
            cur = H * num_dirs
    return params


if __name__ == "__main__":
    cfg = dict(input_size=16, hidden_size=32, num_layers=2, batch_first=False,
               bidirectional=True, pooling="ifo", kernel_size=2,
               first_kernel_size=2, dense=False)
    T, B = 8, 2

    key = jax.random.PRNGKey(0)
    kx, kp = jax.random.split(key)
    x = jax.random.normal(kx, (T, B, cfg["input_size"]), jnp.float32)   # (seq, batch, feat)
    params = init_params(kp, cfg)

    out, h_n = qrnn_forward(x, params, cfg, qrnn_layer_pallas)
    out = jax.block_until_ready(out)
    h_n = jax.block_until_ready(h_n)

    out_ref, h_n_ref = qrnn_forward(x, params, cfg, qrnn_layer_ref)
    out_ref = jax.block_until_ready(out_ref)

    assert out.shape == (T, B, cfg["hidden_size"] * 2)
    assert h_n.shape == (cfg["num_layers"], B, cfg["hidden_size"] * 2)
    np.testing.assert_allclose(np.asarray(out), np.asarray(out_ref), atol=5e-2, rtol=5e-2)
    np.testing.assert_allclose(np.asarray(h_n), np.asarray(h_n_ref), atol=5e-2, rtol=5e-2)
    print("KERNEL_OK")
</pallas_src>

<mosaic_0001>
module attributes {stable_mosaic.version = 11 : i64} {
  func.func @kernel(%arg0: i32, %arg1: memref<1x64x32xbf16, #tpu.memory_space<vmem>>, %arg2: memref<1x32x128xbf16, #tpu.memory_space<vmem>>, %arg3: memref<1x1x128xf32, #tpu.memory_space<vmem>>, %arg4: memref<1x64x32xf32, #tpu.memory_space<vmem>>, %arg5: memref<64x32xf32, #tpu.memory_space<vmem>>, %arg6: memref<64x32xf32, #tpu.memory_space<vmem>>) attributes {dimension_semantics = [#tpu.dimension_semantics<parallel>], iteration_bounds = array<i64: 2>, scalar_prefetch = 0 : i64, scratch_operands = 2 : i64, tpu.core_type = #tpu.core_type<tc>, window_params = [{transform_indices = @transform_0, window_bounds = array<i64: 1, 64, 32>}, {transform_indices = @transform_1, window_bounds = array<i64: 1, 32, 128>}, {transform_indices = @transform_2, window_bounds = array<i64: 1, 1, 128>}, {transform_indices = @transform_3, window_bounds = array<i64: 1, 64, 32>}]} {
    %c0 = arith.constant 0 : index
    %c0_0 = arith.constant 0 : index
    %c0_1 = arith.constant 0 : index
    %0 = vector.load %arg1[%c0, %c0_0, %c0_1] : memref<1x64x32xbf16, #tpu.memory_space<vmem>>, vector<1x64x32xbf16>
    %1 = vector.shape_cast %0 : vector<1x64x32xbf16> to vector<64x32xbf16>
    %c0_2 = arith.constant 0 : index
    %c0_3 = arith.constant 0 : index
    %c0_4 = arith.constant 0 : index
    %2 = vector.load %arg2[%c0_2, %c0_3, %c0_4] : memref<1x32x128xbf16, #tpu.memory_space<vmem>>, vector<1x32x128xbf16>
    %3 = vector.shape_cast %2 : vector<1x32x128xbf16> to vector<32x128xbf16>
    %cst = arith.constant dense<0.000000e+00> : vector<64x128xf32>
    %4 = tpu.matmul %1, %3, %cst {dimension_numbers = #tpu.dot_dimension_numbers<[1], [0], [0], [1], [0, 0, 1, 1], [], []>} : vector<64x32xbf16>, vector<32x128xbf16>, vector<64x128xf32> -> vector<64x128xf32>
    %c0_5 = arith.constant 0 : index
    %c0_6 = arith.constant 0 : index
    %c0_7 = arith.constant 0 : index
    %5 = vector.load %arg3[%c0_5, %c0_6, %c0_7] : memref<1x1x128xf32, #tpu.memory_space<vmem>>, vector<1x1x128xf32>
    %6 = vector.shape_cast %5 : vector<1x1x128xf32> to vector<1x128xf32>
    %7 = vector.broadcast %6 : vector<1x128xf32> to vector<64x128xf32>
    %8 = arith.addf %4, %7 : vector<64x128xf32>
    %9 = arith.negf %8 : vector<64x128xf32>
    %10 = math.exp %9 : vector<64x128xf32>
    %cst_8 = arith.constant 1.000000e+00 : f32
    %11 = vector.broadcast %cst_8 : f32 to vector<64x128xf32>
    %12 = arith.addf %11, %10 : vector<64x128xf32>
    %13 = arith.divf %11, %12 : vector<64x128xf32>
    %14 = vector.extract_strided_slice %8 {offsets = [0, 0], sizes = [64, 32], strides = [1, 1]} : vector<64x128xf32> to vector<64x32xf32>
    %15 = math.tanh %14 : vector<64x32xf32>
    %16 = vector.extract_strided_slice %13 {offsets = [0, 32], sizes = [64, 32], strides = [1, 1]} : vector<64x128xf32> to vector<64x32xf32>
    %17 = vector.extract_strided_slice %13 {offsets = [0, 96], sizes = [64, 32], strides = [1, 1]} : vector<64x128xf32> to vector<64x32xf32>
    %18 = arith.mulf %17, %15 : vector<64x32xf32>
    %c0_9 = arith.constant 0 : index
    %c0_10 = arith.constant 0 : index
    %19 = vector.load %arg5[%c0_9, %c0_10] : memref<64x32xf32, #tpu.memory_space<vmem>>, vector<64x32xf32>
    tpu.vector_store %arg5[%c0_9, %c0_10], %16 {strides = array<i32>} : memref<64x32xf32, #tpu.memory_space<vmem>>, vector<64x32xf32>,
    %c0_11 = arith.constant 0 : index
    %c0_12 = arith.constant 0 : index
    %20 = vector.load %arg6[%c0_11, %c0_12] : memref<64x32xf32, #tpu.memory_space<vmem>>, vector<64x32xf32>
    tpu.vector_store %arg6[%c0_11, %c0_12], %18 {strides = array<i32>} : memref<64x32xf32, #tpu.memory_space<vmem>>, vector<64x32xf32>,
    %cst_13 = arith.constant 0.000000e+00 : f32
    %21 = vector.broadcast %cst_13 : f32 to vector<8x32xf32>
    %c0_i32 = arith.constant 0 : i32
    %c8_i32 = arith.constant 8 : i32
    %22 = arith.muli %c0_i32, %c8_i32 : i32
    %23 = arith.index_cast %22 : i32 to index
    %c0_14 = arith.constant 0 : index
    %24 = vector.load %arg5[%23, %c0_14] : memref<64x32xf32, #tpu.memory_space<vmem>>, vector<8x32xf32>
    %25 = arith.mulf %24, %21 : vector<8x32xf32>
    %26 = arith.index_cast %22 : i32 to index
    %c0_15 = arith.constant 0 : index
    %27 = vector.load %arg6[%26, %c0_15] : memref<64x32xf32, #tpu.memory_space<vmem>>, vector<8x32xf32>
    %28 = arith.addf %25, %27 : vector<8x32xf32>
    %c0_16 = arith.constant 0 : index
    %29 = arith.index_cast %22 : i32 to index
    %c0_17 = arith.constant 0 : index
    %30 = vector.load %arg4[%c0_16, %29, %c0_17] : memref<1x64x32xf32, #tpu.memory_space<vmem>>, vector<1x8x32xf32>
    %31 = vector.shape_cast %30 : vector<1x8x32xf32> to vector<8x32xf32>
    %32 = vector.shape_cast %28 : vector<8x32xf32> to vector<1x8x32xf32>
    tpu.vector_store %arg4[%c0_16, %29, %c0_17], %32 {strides = array<i32>} : memref<1x64x32xf32, #tpu.memory_space<vmem>>, vector<1x8x32xf32>,
    %c1_i32 = arith.constant 1 : i32
    %c8_i32_18 = arith.constant 8 : i32
    %33 = arith.muli %c1_i32, %c8_i32_18 : i32
    %34 = arith.index_cast %33 : i32 to index
    %c0_19 = arith.constant 0 : index
    %35 = vector.load %arg5[%34, %c0_19] : memref<64x32xf32, #tpu.memory_space<vmem>>, vector<8x32xf32>
    %36 = arith.mulf %35, %28 : vector<8x32xf32>
    %37 = arith.index_cast %33 : i32 to index
    %c0_20 = arith.constant 0 : index
    %38 = vector.load %arg6[%37, %c0_20] : memref<64x32xf32, #tpu.memory_space<vmem>>, vector<8x32xf32>
    %39 = arith.addf %36, %38 : vector<8x32xf32>
    %c0_21 = arith.constant 0 : index
    %40 = arith.index_cast %33 : i32 to index
    %c0_22 = arith.constant 0 : index
    %41 = vector.load %arg4[%c0_21, %40, %c0_22] : memref<1x64x32xf32, #tpu.memory_space<vmem>>, vector<1x8x32xf32>
    %42 = vector.shape_cast %41 : vector<1x8x32xf32> to vector<8x32xf32>
    %43 = vector.shape_cast %39 : vector<8x32xf32> to vector<1x8x32xf32>
    tpu.vector_store %arg4[%c0_21, %40, %c0_22], %43 {strides = array<i32>} : memref<1x64x32xf32, #tpu.memory_space<vmem>>, vector<1x8x32xf32>,
    %c2_i32 = arith.constant 2 : i32
    %c8_i32_23 = arith.constant 8 : i32
    %44 = arith.muli %c2_i32, %c8_i32_23 : i32
    %45 = arith.index_cast %44 : i32 to index
    %c0_24 = arith.constant 0 : index
    %46 = vector.load %arg5[%45, %c0_24] : memref<64x32xf32, #tpu.memory_space<vmem>>, vector<8x32xf32>
    %47 = arith.mulf %46, %39 : vector<8x32xf32>
    %48 = arith.index_cast %44 : i32 to index
    %c0_25 = arith.constant 0 : index
    %49 = vector.load %arg6[%48, %c0_25] : memref<64x32xf32, #tpu.memory_space<vmem>>, vector<8x32xf32>
    %50 = arith.addf %47, %49 : vector<8x32xf32>
    %c0_26 = arith.constant 0 : index
    %51 = arith.index_cast %44 : i32 to index
    %c0_27 = arith.constant 0 : index
    %52 = vector.load %arg4[%c0_26, %51, %c0_27] : memref<1x64x32xf32, #tpu.memory_space<vmem>>, vector<1x8x32xf32>
    %53 = vector.shape_cast %52 : vector<1x8x32xf32> to vector<8x32xf32>
    %54 = vector.shape_cast %50 : vector<8x32xf32> to vector<1x8x32xf32>
    tpu.vector_store %arg4[%c0_26, %51, %c0_27], %54 {strides = array<i32>} : memref<1x64x32xf32, #tpu.memory_space<vmem>>, vector<1x8x32xf32>,
    %c3_i32 = arith.constant 3 : i32
    %c8_i32_28 = arith.constant 8 : i32
    %55 = arith.muli %c3_i32, %c8_i32_28 : i32
    %56 = arith.index_cast %55 : i32 to index
    %c0_29 = arith.constant 0 : index
    %57 = vector.load %arg5[%56, %c0_29] : memref<64x32xf32, #tpu.memory_space<vmem>>, vector<8x32xf32>
    %58 = arith.mulf %57, %50 : vector<8x32xf32>
    %59 = arith.index_cast %55 : i32 to index
    %c0_30 = arith.constant 0 : index
    %60 = vector.load %arg6[%59, %c0_30] : memref<64x32xf32, #tpu.memory_space<vmem>>, vector<8x32xf32>
    %61 = arith.addf %58, %60 : vector<8x32xf32>
    %c0_31 = arith.constant 0 : index
    %62 = arith.index_cast %55 : i32 to index
    %c0_32 = arith.constant 0 : index
    %63 = vector.load %arg4[%c0_31, %62, %c0_32] : memref<1x64x32xf32, #tpu.memory_space<vmem>>, vector<1x8x32xf32>
    %64 = vector.shape_cast %63 : vector<1x8x32xf32> to vector<8x32xf32>
    %65 = vector.shape_cast %61 : vector<8x32xf32> to vector<1x8x32xf32>
    tpu.vector_store %arg4[%c0_31, %62, %c0_32], %65 {strides = array<i32>} : memref<1x64x32xf32, #tpu.memory_space<vmem>>, vector<1x8x32xf32>,
    %c4_i32 = arith.constant 4 : i32
    %c8_i32_33 = arith.constant 8 : i32
    %66 = arith.muli %c4_i32, %c8_i32_33 : i32
    %67 = arith.index_cast %66 : i32 to index
    %c0_34 = arith.constant 0 : index
    %68 = vector.load %arg5[%67, %c0_34] : memref<64x32xf32, #tpu.memory_space<vmem>>, vector<8x32xf32>
    %69 = arith.mulf %68, %61 : vector<8x32xf32>
    %70 = arith.index_cast %66 : i32 to index
    %c0_35 = arith.constant 0 : index
    %71 = vector.load %arg6[%70, %c0_35] : memref<64x32xf32, #tpu.memory_space<vmem>>, vector<8x32xf32>
    %72 = arith.addf %69, %71 : vector<8x32xf32>
    %c0_36 = arith.constant 0 : index
    %73 = arith.index_cast %66 : i32 to index
    %c0_37 = arith.constant 0 : index
    %74 = vector.load %arg4[%c0_36, %73, %c0_37] : memref<1x64x32xf32, #tpu.memory_space<vmem>>, vector<1x8x32xf32>
    %75 = vector.shape_cast %74 : vector<1x8x32xf32> to vector<8x32xf32>
    %76 = vector.shape_cast %72 : vector<8x32xf32> to vector<1x8x32xf32>
    tpu.vector_store %arg4[%c0_36, %73, %c0_37], %76 {strides = array<i32>} : memref<1x64x32xf32, #tpu.memory_space<vmem>>, vector<1x8x32xf32>,
    %c5_i32 = arith.constant 5 : i32
    %c8_i32_38 = arith.constant 8 : i32
    %77 = arith.muli %c5_i32, %c8_i32_38 : i32
    %78 = arith.index_cast %77 : i32 to index
    %c0_39 = arith.constant 0 : index
    %79 = vector.load %arg5[%78, %c0_39] : memref<64x32xf32, #tpu.memory_space<vmem>>, vector<8x32xf32>
    %80 = arith.mulf %79, %72 : vector<8x32xf32>
    %81 = arith.index_cast %77 : i32 to index
    %c0_40 = arith.constant 0 : index
    %82 = vector.load %arg6[%81, %c0_40] : memref<64x32xf32, #tpu.memory_space<vmem>>, vector<8x32xf32>
    %83 = arith.addf %80, %82 : vector<8x32xf32>
    %c0_41 = arith.constant 0 : index
    %84 = arith.index_cast %77 : i32 to index
    %c0_42 = arith.constant 0 : index
    %85 = vector.load %arg4[%c0_41, %84, %c0_42] : memref<1x64x32xf32, #tpu.memory_space<vmem>>, vector<1x8x32xf32>
    %86 = vector.shape_cast %85 : vector<1x8x32xf32> to vector<8x32xf32>
    %87 = vector.shape_cast %83 : vector<8x32xf32> to vector<1x8x32xf32>
    tpu.vector_store %arg4[%c0_41, %84, %c0_42], %87 {strides = array<i32>} : memref<1x64x32xf32, #tpu.memory_space<vmem>>, vector<1x8x32xf32>,
    %c6_i32 = arith.constant 6 : i32
    %c8_i32_43 = arith.constant 8 : i32
    %88 = arith.muli %c6_i32, %c8_i32_43 : i32
    %89 = arith.index_cast %88 : i32 to index
    %c0_44 = arith.constant 0 : index
    %90 = vector.load %arg5[%89, %c0_44] : memref<64x32xf32, #tpu.memory_space<vmem>>, vector<8x32xf32>
    %91 = arith.mulf %90, %83 : vector<8x32xf32>
    %92 = arith.index_cast %88 : i32 to index
    %c0_45 = arith.constant 0 : index
    %93 = vector.load %arg6[%92, %c0_45] : memref<64x32xf32, #tpu.memory_space<vmem>>, vector<8x32xf32>
    %94 = arith.addf %91, %93 : vector<8x32xf32>
    %c0_46 = arith.constant 0 : index
    %95 = arith.index_cast %88 : i32 to index
    %c0_47 = arith.constant 0 : index
    %96 = vector.load %arg4[%c0_46, %95, %c0_47] : memref<1x64x32xf32, #tpu.memory_space<vmem>>, vector<1x8x32xf32>
    %97 = vector.shape_cast %96 : vector<1x8x32xf32> to vector<8x32xf32>
    %98 = vector.shape_cast %94 : vector<8x32xf32> to vector<1x8x32xf32>
    tpu.vector_store %arg4[%c0_46, %95, %c0_47], %98 {strides = array<i32>} : memref<1x64x32xf32, #tpu.memory_space<vmem>>, vector<1x8x32xf32>,
    %c7_i32 = arith.constant 7 : i32
    %c8_i32_48 = arith.constant 8 : i32
    %99 = arith.muli %c7_i32, %c8_i32_48 : i32
    %100 = arith.index_cast %99 : i32 to index
    %c0_49 = arith.constant 0 : index
    %101 = vector.load %arg5[%100, %c0_49] : memref<64x32xf32, #tpu.memory_space<vmem>>, vector<8x32xf32>
    %102 = arith.mulf %101, %94 : vector<8x32xf32>
    %103 = arith.index_cast %99 : i32 to index
    %c0_50 = arith.constant 0 : index
    %104 = vector.load %arg6[%103, %c0_50] : memref<64x32xf32, #tpu.memory_space<vmem>>, vector<8x32xf32>
    %105 = arith.addf %102, %104 : vector<8x32xf32>
    %c0_51 = arith.constant 0 : index
    %106 = arith.index_cast %99 : i32 to index
    %c0_52 = arith.constant 0 : index
    %107 = vector.load %arg4[%c0_51, %106, %c0_52] : memref<1x64x32xf32, #tpu.memory_space<vmem>>, vector<1x8x32xf32>
    %108 = vector.shape_cast %107 : vector<1x8x32xf32> to vector<8x32xf32>
    %109 = vector.shape_cast %105 : vector<8x32xf32> to vector<1x8x32xf32>
    tpu.vector_store %arg4[%c0_51, %106, %c0_52], %109 {strides = array<i32>} : memref<1x64x32xf32, #tpu.memory_space<vmem>>, vector<1x8x32xf32>,
    %c8_i32_53 = arith.constant 8 : i32
    %c0_54 = arith.constant 0 : index
    %c0_55 = arith.constant 0 : index
    %c0_56 = arith.constant 0 : index
    %110 = vector.load %arg4[%c0_54, %c0_55, %c0_56] : memref<1x64x32xf32, #tpu.memory_space<vmem>>, vector<1x64x32xf32>
    %111 = vector.shape_cast %110 : vector<1x64x32xf32> to vector<64x32xf32>
    %112 = vector.extract_strided_slice %13 {offsets = [0, 64], sizes = [64, 32], strides = [1, 1]} : vector<64x128xf32> to vector<64x32xf32>
    %113 = arith.mulf %111, %112 : vector<64x32xf32>
    %c0_57 = arith.constant 0 : index
    %c0_58 = arith.constant 0 : index
    %c0_59 = arith.constant 0 : index
    %114 = vector.load %arg4[%c0_57, %c0_58, %c0_59] : memref<1x64x32xf32, #tpu.memory_space<vmem>>, vector<1x64x32xf32>
    %115 = vector.shape_cast %114 : vector<1x64x32xf32> to vector<64x32xf32>
    %116 = vector.shape_cast %113 : vector<64x32xf32> to vector<1x64x32xf32>
    tpu.vector_store %arg4[%c0_57, %c0_58, %c0_59], %116 {strides = array<i32>} : memref<1x64x32xf32, #tpu.memory_space<vmem>>, vector<1x64x32xf32>,
    return
  }
  func.func @transform_0(%arg0: i32) -> (i32, i32, i32) {
    %c0_i32 = arith.constant 0 : i32
    %c0_i32_0 = arith.constant 0 : i32
    %c0_i32_1 = arith.constant 0 : i32
    return %arg0, %c0_i32, %c0_i32_0 : i32, i32, i32
  }
  func.func @transform_1(%arg0: i32) -> (i32, i32, i32) {
    %c0_i32 = arith.constant 0 : i32
    %c0_i32_0 = arith.constant 0 : i32
    %c0_i32_1 = arith.constant 0 : i32
    return %arg0, %c0_i32, %c0_i32_0 : i32, i32, i32
  }
  func.func @transform_2(%arg0: i32) -> (i32, i32, i32) {
    %c0_i32 = arith.constant 0 : i32
    %c0_i32_0 = arith.constant 0 : i32
    %c0_i32_1 = arith.constant 0 : i32
    return %arg0, %c0_i32, %c0_i32_0 : i32, i32, i32
  }
  func.func @transform_3(%arg0: i32) -> (i32, i32, i32) {
    %c0_i32 = arith.constant 0 : i32
    %c0_i32_0 = arith.constant 0 : i32
    %c0_i32_1 = arith.constant 0 : i32
    return %arg0, %c0_i32, %c0_i32_0 : i32, i32, i32
  }
}

</mosaic_0001>

<llo_original>
// kernel: tpu_custom_call.1
$region0: #{tpu_custom_call.1}
  #allocation0 [shape = 'u32[]', space=smem, size = 0x4, offset = 0x4, fixed_abs, tag = 'smem constant byte address 0x4 - core index']
  #allocation1 [shape = 'u32[144,128]{1,0:T(1,128)}', space=vmem, size = 0x12000, scoped, tag = 'internal scratch']
  #allocation2 [shape = 'f32[64,32]{1,0:T(8,128)}', space=vmem, size = 0x8000, scoped, tag = 'scratch operand']
  #allocation3 [shape = 'f32[64,32]{1,0:T(8,128)}', space=vmem, size = 0x8000, scoped, tag = 'scratch operand']
  %s0 = inlined_call_operand.vmem [shape: bf16[2,64,32], index: 0, kind: input, shape index: {}]
  %s1 = inlined_call_operand.vmem [shape: bf16[2,32,128], index: 1, kind: input, shape index: {}]
  %s2 = inlined_call_operand.vmem [shape: f32[2,1,128], index: 2, kind: input, shape index: {}]
  %s3 = inlined_call_operand.vmem [shape: f32[2,64,32], index: 3, kind: output, shape index: {}]
  %s4 = sld [smem:[#allocation0]]
  $region45: #{tpu_custom_call.1} parent=0
    _
  %s6 = ssub.s32 1, %s4
  %s7 = scalar_select 0, %s6, %s4
  loop: start=0, step=1, limit=4
  $region2: #{tpu_custom_call.1} parent=0 // loop_pre_header
    _
  $region3: #{tpu_custom_call.1} parent=0 // loop_header
    %s9 = sphi 0, %s13
    %p10 = scmp.ge.s32.totalorder %s9, 4
    %s19 = sphi 0, %s21
    %s22 = sphi 0, %s19
    %s23 = sphi 0, %s22
    %s39 = sphi 0, %s23
    %s45 = sphi 0, %s47
    %s48 = sphi 0, %s45
    %s49 = sphi 0, %s48
    %s65 = sphi 0, %s49
    %s71 = sphi 0, %s73
    %s74 = sphi 0, %s71
    %s75 = sphi 0, %s74
    %s91 = sphi 0, %s75
    %s97 = sphi 0, %s99
    %s100 = sphi 0, %s97
    %s101 = sphi 0, %s100
    %s117 = sphi 0, %s101
  $region4: #{tpu_custom_call.1} parent=0 // loop_header_branch
    %12 = sbr.rel (%p10) target = $region8
  $region5: #{tpu_custom_call.1} parent=0 // loop_body
    %s14 = ssub.s32 %s9, 1
    %s15 = ssub.s32 %s9, 2
    %s16 = sadd.s32 %s9, 1
    %s17 = ssub.s32 %s9, %s16
    %p18 = scmp.eq.s32.totalorder %s17, 0
    %s20 = sadd.s32 %s19, 1
    %s21 = scalar_select %p18, %s19, %s20
    %p24 = pneg %p18
    %p25 = scmp.eq.s32.totalorder %s9, 1
    %p26 = por %p24, %p25
    %p27 = scmp.ne.s32.totalorder %s19, %s22
    %p28 = scmp.eq.s32.totalorder %s9, 0
    %p29 = por %p27, %p28
    %p30 = scmp.ne.s32.totalorder %s19, %s22
    %p31 = scmp.eq.s32.totalorder %s14, 1
    %p32 = por %p30, %p31
    %p33 = scmp.ne.s32.totalorder %s22, %s23
    %p34 = scmp.eq.s32.totalorder %s14, 0
    %p35 = por %p33, %p34
    %p36 = scmp.ne.s32.totalorder %s22, %s23
    %p37 = scmp.eq.s32.totalorder %s15, 1
    %p38 = por %p36, %p37
    %p40 = scmp.ne.s32.totalorder %s23, %s39
    %p41 = scmp.eq.s32.totalorder %s15, 0
    %p42 = por %p40, %p41
    %s43 = ssub.s32 %s9, %s16
    %p44 = scmp.eq.s32.totalorder %s43, 0
    %s46 = sadd.s32 %s45, 1
    %s47 = scalar_select %p44, %s45, %s46
    %p50 = pneg %p44
    %p51 = scmp.eq.s32.totalorder %s9, 1
    %p52 = por %p50, %p51
    %p53 = scmp.ne.s32.totalorder %s45, %s48
    %p54 = scmp.eq.s32.totalorder %s9, 0
    %p55 = por %p53, %p54
    %p56 = scmp.ne.s32.totalorder %s45, %s48
    %p57 = scmp.eq.s32.totalorder %s14, 1
    %p58 = por %p56, %p57
    %p59 = scmp.ne.s32.totalorder %s48, %s49
    %p60 = scmp.eq.s32.totalorder %s14, 0
    %p61 = por %p59, %p60
    %p62 = scmp.ne.s32.totalorder %s48, %s49
    %p63 = scmp.eq.s32.totalorder %s15, 1
    %p64 = por %p62, %p63
    %p66 = scmp.ne.s32.totalorder %s49, %s65
    %p67 = scmp.eq.s32.totalorder %s15, 0
    %p68 = por %p66, %p67
    %s69 = ssub.s32 %s9, %s16
    %p70 = scmp.eq.s32.totalorder %s69, 0
    %s72 = sadd.s32 %s71, 1
    %s73 = scalar_select %p70, %s71, %s72
    %p76 = pneg %p70
    %p77 = scmp.eq.s32.totalorder %s9, 1
    %p78 = por %p76, %p77
    %p79 = scmp.ne.s32.totalorder %s71, %s74
    %p80 = scmp.eq.s32.totalorder %s9, 0
    %p81 = por %p79, %p80
    %p82 = scmp.ne.s32.totalorder %s71, %s74
    %p83 = scmp.eq.s32.totalorder %s14, 1
    %p84 = por %p82, %p83
    %p85 = scmp.ne.s32.totalorder %s74, %s75
    %p86 = scmp.eq.s32.totalorder %s14, 0
    %p87 = por %p85, %p86
    %p88 = scmp.ne.s32.totalorder %s74, %s75
    %p89 = scmp.eq.s32.totalorder %s15, 1
    %p90 = por %p88, %p89
    %p92 = scmp.ne.s32.totalorder %s75, %s91
    %p93 = scmp.eq.s32.totalorder %s15, 0
    %p94 = por %p92, %p93
    %s95 = ssub.s32 %s9, %s16
    %p96 = scmp.eq.s32.totalorder %s95, 0
    %s98 = sadd.s32 %s97, 1
    %s99 = scalar_select %p96, %s97, %s98
    %p102 = pneg %p96
    %p103 = scmp.eq.s32.totalorder %s9, 1
    %p104 = por %p102, %p103
    %p105 = scmp.ne.s32.totalorder %s97, %s100
    %p106 = scmp.eq.s32.totalorder %s9, 0
    %p107 = por %p105, %p106
    %p108 = scmp.ne.s32.totalorder %s97, %s100
    %p109 = scmp.eq.s32.totalorder %s14, 1
    %p110 = por %p108, %p109
    %p111 = scmp.ne.s32.totalorder %s100, %s101
    %p112 = scmp.eq.s32.totalorder %s14, 0
    %p113 = por %p111, %p112
    %p114 = scmp.ne.s32.totalorder %s100, %s101
    %p115 = scmp.eq.s32.totalorder %s15, 1
    %p116 = por %p114, %p115
    %p118 = scmp.ne.s32.totalorder %s101, %s117
    %p119 = scmp.eq.s32.totalorder %s15, 0
    %p120 = por %p118, %p119
    %p121 = scmp.le.s32.totalorder 1, %s9
    %p122 = scmp.lt.s32.totalorder %s9, 3
    %p123 = pnand %p121, %p122
    %p124 = pneg %p123
    // Predicated region
    $region9: #{tpu_custom_call.1} parent=5 // pred_check
      _
    $region10: #{tpu_custom_call.1} parent=5 // pred_check_branch
      %126 = sbr.rel (%p123) target = $region12
    $region11: #{tpu_custom_call.1} parent=5 // pred_region
      %s127 = ssub.s32 %s9, 1
    $region12: #{tpu_custom_call.1} parent=5 // pred_fallthru
      _
    %p128 = scmp.lt.s32.totalorder %s9, 2
    // Predicated region
    $region13: #{tpu_custom_call.1} parent=5 // pred_check
      %p129 = pneg %p128
    $region14: #{tpu_custom_call.1} parent=5 // pred_check_branch
      %131 = sbr.rel (%p129) target = $region16
    $region15: #{tpu_custom_call.1} parent=5 // pred_region
      // Predicated region
      $region17: #{tpu_custom_call.1} parent=15 // pred_check
        %p132 = pneg %p29
      $region18: #{tpu_custom_call.1} parent=15 // pred_check_branch
        %134 = sbr.rel (%p132) target = $region20
      $region19: #{tpu_custom_call.1} parent=15 // pred_region
        %p135 = scmp.lt.s32.totalorder %s9, 1
        %s136 = scalar_select %p135, %s9, 1
        %s137 = smul.addr %s136, 8
        %s138 = smul.addr %s137, 4
        %s139 = scalar_lea.vmem %s0, %s138
      $region20: #{tpu_custom_call.1} parent=15 // pred_fallthru
        _
      // Predicated region
      $region21: #{tpu_custom_call.1} parent=15 // pred_check
        %p140 = pneg %p55
      $region22: #{tpu_custom_call.1} parent=15 // pred_check_branch
        %142 = sbr.rel (%p140) target = $region24
      $region23: #{tpu_custom_call.1} parent=15 // pred_region
        %p143 = scmp.lt.s32.totalorder %s9, 1
        %s144 = scalar_select %p143, %s9, 1
        %s145 = smul.addr %s144, 4
        %s146 = smul.addr %s145, 4
        %s147 = scalar_lea.vmem %s1, %s146
      $region24: #{tpu_custom_call.1} parent=15 // pred_fallthru
        _
      // Predicated region
      $region25: #{tpu_custom_call.1} parent=15 // pred_check
        %p148 = pneg %p81
      $region26: #{tpu_custom_call.1} parent=15 // pred_check_branch
        %150 = sbr.rel (%p148) target = $region28
      $region27: #{tpu_custom_call.1} parent=15 // pred_region
        %p151 = scmp.lt.s32.totalorder %s9, 1
        %s152 = scalar_select %p151, %s9, 1
        %s153 = scalar_lea.vmem %s2, %s152
      $region28: #{tpu_custom_call.1} parent=15 // pred_fallthru
        _
    $region16: #{tpu_custom_call.1} parent=5 // pred_fallthru
      _
    %p154 = scmp.le.s32.totalorder 1, %s9
    %p155 = scmp.lt.s32.totalorder %s9, 3
    %p156 = pnand %p154, %p155
    %p157 = pneg %p156
    // Predicated region
    $region29: #{tpu_custom_call.1} parent=5 // pred_check
      _
    $region30: #{tpu_custom_call.1} parent=5 // pred_check_branch
      %159 = sbr.rel (%p156) target = $region32
    $region31: #{tpu_custom_call.1} parent=5 // pred_region
      %s160 = ssub.s32 %s9, 1
      %p161 = scmp.lt.s32.totalorder %s14, 1
      %s162 = scalar_select %p161, %s14, 1
      %s163 = smul.addr %s162, 8
      %s164 = smul.addr %s163, 4
      %s165 = scalar_lea.vmem %s0, %s164
      %p166 = pneg %p35
      %p167 = pneg %p32
      %p168 = scmp.lt.s32.totalorder %s14, 1
      %s169 = scalar_select %p168, %s14, 1
      %s170 = smul.addr %s169, 4
      %s171 = smul.addr %s170, 4
      %s172 = scalar_lea.vmem %s1, %s171
      %p173 = pneg %p61
      %p174 = pneg %p58
      %p175 = scmp.lt.s32.totalorder %s14, 1
      %s176 = scalar_select %p175, %s14, 1
      %s177 = scalar_lea.vmem %s2, %s176
      %p178 = pneg %p87
      %p179 = pneg %p84
      %p180 = pneg %p113
      %p181 = pneg %p110
      %p182 = scmp.lt.s32.totalorder %s14, 1
      %s183 = scalar_select %p182, %s14, 1
      %s184 = smul.addr %s183, 8
      %s185 = smul.addr %s184, 8
      %s186 = scalar_lea.vmem %s3, %s185
      %p187 = scmp.lt.s32.totalorder %s14, 1
      %s188 = scalar_select %p187, %s14, 1
      %s189 = smul.addr %s188, 8
      %s190 = smul.addr %s189, 4
      %s191 = scalar_lea.vmem %s0, %s190
      %p192 = scmp.lt.s32.totalorder %s14, 1
      %s193 = scalar_select %p192, %s14, 1
      %s194 = smul.addr %s193, 4
      %s195 = smul.addr %s194, 4
      %s196 = scalar_lea.vmem %s1, %s195
      %p197 = scmp.lt.s32.totalorder %s14, 1
      %s198 = scalar_select %p197, %s14, 1
      %s199 = scalar_lea.vmem %s2, %s198
      %p200 = scmp.lt.s32.totalorder %s14, 1
      %s201 = scalar_select %p200, %s14, 1
      %s202 = smul.addr %s201, 8
      %s203 = smul.addr %s202, 8
      %s204 = scalar_lea.vmem %s3, %s203
      %v206 = vld [vmem:[%s191] sm:$0xf]
      %v207 = vld [vmem:[%s191 + $0x4] sm:$0xf]
      %v208 = vld [vmem:[%s191 + $0x8] sm:$0xf]
      %v209 = vld [vmem:[%s191 + $0xc] sm:$0xf]
      %v210 = vld [vmem:[%s191 + $0x10] sm:$0xf]
      %v211 = vld [vmem:[%s191 + $0x14] sm:$0xf]
      %v212 = vld [vmem:[%s191 + $0x18] sm:$0xf]
      %v213 = vld [vmem:[%s191 + $0x1c] sm:$0xf]
      %v214 = vld [vmem:[%s196] sm:$0xf]
      %v215 = vld [vmem:[%s196 + $0x4] sm:$0xf]
      %v216 = vld [vmem:[%s196 + $0x8] sm:$0xf]
      %v217 = vld [vmem:[%s196 + $0xc] sm:$0xf]
      %v218 = vld [vmem:[%s199] sm:$0x1]
      %v220 = vlaneseq
      %v221 = vshrl.u32 %v220, 7
      %v222 = vsub.s32 0, %v221
      %v223 = vrot.slane %v218, %v222
      %v233 = vunpack.c.l.b16 %v206
      %v234 = vunpack.c.l.b16 %v207
      %v235 = vunpack.c.l.b16 %v208
      %v236 = vunpack.c.l.b16 %v209
      %v237 = vunpack.c.l.b16 %v210
      %v238 = vunpack.c.l.b16 %v211
      %v239 = vunpack.c.l.b16 %v212
      %v240 = vunpack.c.l.b16 %v213
      %v241 = vpack.c.b16 %v234, %v233
      %v242 = vpack.c.b16 %v236, %v235
      %v243 = vpack.c.b16 %v238, %v237
      %v244 = vpack.c.b16 %v240, %v239
      %v249 = vunpack.c.l.b16 %v214
      %v250 = vunpack.c.l.b16 %v215
      %v251 = vunpack.c.l.b16 %v216
      %v252 = vunpack.c.l.b16 %v217
      %v253 = vpack.c.b16 %v250, %v249
      %v254 = vpack.c.b16 %v252, %v251
      %vm257 = vcmask 261120
      %v259 = vsel %vm257, %v241, 0
      %v262 = vsel %vm257, %v242, 0
      %v265 = vsel %vm257, %v243, 0
      %v268 = vsel %vm257, %v244, 0
      %270 = vmatprep.subr.bf16.mxu0 0
      %271 = vmatpush1.bf16.msra.mxu0 0
      %272 = vmatprep.subr.bf16.mxu0 0
      %273 = vmatpush1.bf16.msra.mxu0 0
      %274 = vmatprep.subr.bf16.mxu0 0
      %275 = vmatpush1.bf16.msra.mxu0 0
      %276 = vmatprep.subr.bf16.mxu0 0
      %277 = vmatpush1.bf16.msra.mxu0 0
      %278 = vmatprep.subr.bf16.mxu0 0
      %279 = vmatpush1.bf16.msra.mxu0 0
      %280 = vmatprep.subr.bf16.mxu0 0
      %281 = vmatpush1.bf16.msra.mxu0 0
      %282 = vmatprep.subr.bf16.mxu0 0
      %283 = vmatpush1.bf16.msra.mxu0 %v254
      %284 = vmatprep.subr.bf16.mxu0 0
      %285 = vmatpush1.bf16.msra.mxu0 %v253
      %286 = vmatprep.subr.bf16.mxu0 0
      %287 = vmatpush2.bf16.msra.mxu0 0
      %288 = vmatprep.subr.bf16.mxu0 0
      %289 = vmatpush2.bf16.msra.mxu0 0
      %290 = vmatprep.subr.bf16.mxu0 0
      %291 = vmatpush2.bf16.msra.mxu0 0
      %292 = vmatprep.subr.bf16.mxu0 0
      %293 = vmatpush2.bf16.msra.mxu0 0
      %294 = vmatprep.subr.bf16.mxu0 0
      %295 = vmatpush2.bf16.msra.mxu0 0
      %296 = vmatprep.subr.bf16.mxu0 0
      %297 = vmatpush2.bf16.msra.mxu0 0
      %298 = vmatprep.subr.bf16.mxu0 0
      %299 = vmatpush2.bf16.msra.mxu0 0
      %300 = vmatprep.subr.bf16.mxu0 0
      %301 = vmatpush2.bf16.msra.mxu0 0
      %302 = vmatprep.mubr.bf16.mxu0 0
      %303 = vmatmul.mubr.bf16.gmra.mxu0 %v259
      %v304 = vpop.f32.mrf.mxu0
      %v305 = vadd.f32 %v223, %v304
      %v306 = vpop.f32.mrf.mxu0
      %v307 = vpop.f32.mrf.mxu0
      %v308 = vadd.f32 %v223, %v307
      %v309 = vpop.f32.mrf.mxu0
      %310 = vmatprep.mubr.bf16.mxu0 0
      %311 = vmatmul.mubr.bf16.gmra.mxu0 %v262
      %v312 = vpop.f32.mrf.mxu0
      %v313 = vadd.f32 %v223, %v312
      %v314 = vpop.f32.mrf.mxu0
      %v315 = vpop.f32.mrf.mxu0
      %v316 = vadd.f32 %v223, %v315
      %v317 = vpop.f32.mrf.mxu0
      %318 = vmatprep.mubr.bf16.mxu0 0
      %319 = vmatmul.mubr.bf16.gmra.mxu0 %v265
      %v320 = vpop.f32.mrf.mxu0
      %v321 = vadd.f32 %v223, %v320
      %v322 = vpop.f32.mrf.mxu0
      %v323 = vpop.f32.mrf.mxu0
      %v324 = vadd.f32 %v223, %v323
      %v325 = vpop.f32.mrf.mxu0
      %326 = vmatprep.mubr.bf16.mxu0 0
      %327 = vmatmul.mubr.bf16.gmra.mxu0 %v268
      %v328 = vpop.f32.mrf.mxu0
      %v329 = vadd.f32 %v223, %v328
      %v330 = vpop.f32.mrf.mxu0
      %v331 = vpop.f32.mrf.mxu0
      %v332 = vadd.f32 %v223, %v331
      %v333 = vpop.f32.mrf.mxu0
      %334 = vdwg.mxu0
      %v335 = vxor.u32 %v305, 2147483648
      %v336 = vxor.u32 %v308, 2147483648
      %v337 = vxor.u32 %v313, 2147483648
      %v338 = vxor.u32 %v316, 2147483648
      %v339 = vxor.u32 %v321, 2147483648
      %v340 = vxor.u32 %v324, 2147483648
      %v341 = vxor.u32 %v329, 2147483648
      %v342 = vxor.u32 %v332, 2147483648
      %v343 = vmul.f32 %v335, 1.442695
      %v344 = vpow.pop %v343
      %v345 = vmul.f32 %v336, 1.442695
      %v346 = vpow.pop %v345
      %v347 = vmul.f32 %v337, 1.442695
      %v348 = vpow.pop %v347
      %v349 = vmul.f32 %v338, 1.442695
      %v350 = vpow.pop %v349
      %v351 = vmul.f32 %v339, 1.442695
      %v352 = vpow.pop %v351
      %v353 = vmul.f32 %v340, 1.442695
      %v354 = vpow.pop %v353
      %v355 = vmul.f32 %v341, 1.442695
      %v356 = vpow.pop %v355
      %v357 = vmul.f32 %v342, 1.442695
      %v358 = vpow.pop %v357
      %v359 = vadd.f32 %v344, 1.0
      %v360 = vadd.f32 %v346, 1.0
      %v361 = vadd.f32 %v348, 1.0
      %v362 = vadd.f32 %v350, 1.0
      %v363 = vadd.f32 %v352, 1.0
      %v364 = vadd.f32 %v354, 1.0
      %v365 = vadd.f32 %v356, 1.0
      %v366 = vadd.f32 %v358, 1.0
      %v367 = vrcp.pop %v359
      %v368 = vmul.f32 1.0, %v367
      %v369 = vrcp.pop %v360
      %v370 = vmul.f32 1.0, %v369
      %v371 = vrcp.pop %v361
      %v372 = vmul.f32 1.0, %v371
      %v373 = vrcp.pop %v362
      %v374 = vmul.f32 1.0, %v373
      %v375 = vrcp.pop %v363
      %v376 = vmul.f32 1.0, %v375
      %v377 = vrcp.pop %v364
      %v378 = vmul.f32 1.0, %v377
      %v379 = vrcp.pop %v365
      %v380 = vmul.f32 1.0, %v379
      %v381 = vrcp.pop %v366
      %v382 = vmul.f32 1.0, %v381
      %v383 = vtanh.pop %v305
      %v384 = vtanh.pop %v308
      %v385 = vtanh.pop %v313
      %v386 = vtanh.pop %v316
      %v387 = vtanh.pop %v321
      %v388 = vtanh.pop %v324
      %v389 = vtanh.pop %v329
      %v390 = vtanh.pop %v332
      %399 = vrot.lane.b32.xlu0 %v383, 96
      %v400 = vpop.permute.xlu0 %399
      %401 = vrot.lane.b32.xlu0 %v384, 96
      %v402 = vpop.permute.xlu0 %401
      %403 = vrot.lane.b32.xlu0 %v385, 96
      %v404 = vpop.permute.xlu0 %403
      %405 = vrot.lane.b32.xlu0 %v386, 96
      %v406 = vpop.permute.xlu0 %405
      %407 = vrot.lane.b32.xlu0 %v387, 96
      %v408 = vpop.permute.xlu0 %407
      %409 = vrot.lane.b32.xlu0 %v388, 96
      %v410 = vpop.permute.xlu0 %409
      %411 = vrot.lane.b32.xlu0 %v389, 96
      %v412 = vpop.permute.xlu0 %411
      %413 = vrot.lane.b32.xlu0 %v390, 96
      %v414 = vpop.permute.xlu0 %413
      %v423 = vmul.f32 %v368, %v400
      %v424 = vmul.f32 %v370, %v402
      %v425 = vmul.f32 %v372, %v404
      %v426 = vmul.f32 %v374, %v406
      %v427 = vmul.f32 %v376, %v408
      %v428 = vmul.f32 %v378, %v410
      %v429 = vmul.f32 %v380, %v412
      %v430 = vmul.f32 %v382, %v414
      %439 = vrot.lane.b32.xlu0 %v368, 96
      %v440 = vpop.permute.xlu0 %439
      %441 = vrot.lane.b32.xlu0 %v370, 96
      %v442 = vpop.permute.xlu0 %441
      %443 = vrot.lane.b32.xlu0 %v372, 96
      %v444 = vpop.permute.xlu0 %443
      %445 = vrot.lane.b32.xlu0 %v374, 96
      %v446 = vpop.permute.xlu0 %445
      %447 = vrot.lane.b32.xlu0 %v376, 96
      %v448 = vpop.permute.xlu0 %447
      %449 = vrot.lane.b32.xlu0 %v378, 96
      %v450 = vpop.permute.xlu0 %449
      %451 = vrot.lane.b32.xlu0 %v380, 96
      %v452 = vpop.permute.xlu0 %451
      %453 = vrot.lane.b32.xlu0 %v382, 96
      %v454 = vpop.permute.xlu0 %453
      %463 = vst.msk [vmem:[#allocation2] sm:$0xff] %vm257, %v440
      %464 = vst.msk [vmem:[#allocation2 + $0x8] sm:$0xff] %vm257, %v442
      %465 = vst.msk [vmem:[#allocation2 + $0x10] sm:$0xff] %vm257, %v444
      %466 = vst.msk [vmem:[#allocation2 + $0x18] sm:$0xff] %vm257, %v446
      %467 = vst.msk [vmem:[#allocation2 + $0x20] sm:$0xff] %vm257, %v448
      %468 = vst.msk [vmem:[#allocation2 + $0x28] sm:$0xff] %vm257, %v450
      %469 = vst.msk [vmem:[#allocation2 + $0x30] sm:$0xff] %vm257, %v452
      %470 = vst.msk [vmem:[#allocation2 + $0x38] sm:$0xff] %vm257, %v454
      %479 = vrot.lane.b32.xlu0 %v423, 32
      %v480 = vpop.permute.xlu0 %479
      %481 = vrot.lane.b32.xlu0 %v424, 32
      %v482 = vpop.permute.xlu0 %481
      %483 = vrot.lane.b32.xlu0 %v425, 32
      %v484 = vpop.permute.xlu0 %483
      %485 = vrot.lane.b32.xlu0 %v426, 32
      %v486 = vpop.permute.xlu0 %485
      %487 = vrot.lane.b32.xlu0 %v427, 32
      %v488 = vpop.permute.xlu0 %487
      %489 = vrot.lane.b32.xlu0 %v428, 32
      %v490 = vpop.permute.xlu0 %489
      %491 = vrot.lane.b32.xlu0 %v429, 32
      %v492 = vpop.permute.xlu0 %491
      %493 = vrot.lane.b32.xlu0 %v430, 32
      %v494 = vpop.permute.xlu0 %493
      %503 = vst.msk [vmem:[#allocation3] sm:$0xff] %vm257, %v480
      %504 = vst.msk [vmem:[#allocation3 + $0x8] sm:$0xff] %vm257, %v482
      %505 = vst.msk [vmem:[#allocation3 + $0x10] sm:$0xff] %vm257, %v484
      %506 = vst.msk [vmem:[#allocation3 + $0x18] sm:$0xff] %vm257, %v486
      %507 = vst.msk [vmem:[#allocation3 + $0x20] sm:$0xff] %vm257, %v488
      %508 = vst.msk [vmem:[#allocation3 + $0x28] sm:$0xff] %vm257, %v490
      %509 = vst.msk [vmem:[#allocation3 + $0x30] sm:$0xff] %vm257, %v492
      %510 = vst.msk [vmem:[#allocation3 + $0x38] sm:$0xff] %vm257, %v494
      %v511 = vld [vmem:[#allocation2] sm:$0xff]
      %v512 = vmul.f32 %v511, 0.0
      %v513 = vld [vmem:[#allocation3] sm:$0xff]
      %v514 = vadd.f32 %v512, %v513
      %515 = vst.msk [vmem:[%s204] sm:$0xff] %vm257, %v514
      %v516 = vld [vmem:[#allocation2 + $0x8] sm:$0xff]
      %v517 = vmul.f32 %v516, %v514
      %v518 = vld [vmem:[#allocation3 + $0x8] sm:$0xff]
      %v519 = vadd.f32 %v517, %v518
      %520 = vst.msk [vmem:[%s204 + $0x8] sm:$0xff] %vm257, %v519
      %v521 = vld [vmem:[#allocation2 + $0x10] sm:$0xff]
      %v522 = vmul.f32 %v521, %v519
      %v523 = vld [vmem:[#allocation3 + $0x10] sm:$0xff]
      %v524 = vadd.f32 %v522, %v523
      %525 = vst.msk [vmem:[%s204 + $0x10] sm:$0xff] %vm257, %v524
      %v526 = vld [vmem:[#allocation2 + $0x18] sm:$0xff]
      %v527 = vmul.f32 %v526, %v524
      %v528 = vld [vmem:[#allocation3 + $0x18] sm:$0xff]
      %v529 = vadd.f32 %v527, %v528
      %530 = vst.msk [vmem:[%s204 + $0x18] sm:$0xff] %vm257, %v529
      %v531 = vld [vmem:[#allocation2 + $0x20] sm:$0xff]
      %v532 = vmul.f32 %v531, %v529
      %v533 = vld [vmem:[#allocation3 + $0x20] sm:$0xff]
      %v534 = vadd.f32 %v532, %v533
      %535 = vst.msk [vmem:[%s204 + $0x20] sm:$0xff] %vm257, %v534
      %v536 = vld [vmem:[#allocation2 + $0x28] sm:$0xff]
      %v537 = vmul.f32 %v536, %v534
      %v538 = vld [vmem:[#allocation3 + $0x28] sm:$0xff]
      %v539 = vadd.f32 %v537, %v538
      %540 = vst.msk [vmem:[%s204 + $0x28] sm:$0xff] %vm257, %v539
      %v541 = vld [vmem:[#allocation2 + $0x30] sm:$0xff]
      %v542 = vmul.f32 %v541, %v539
      %v543 = vld [vmem:[#allocation3 + $0x30] sm:$0xff]
      %v544 = vadd.f32 %v542, %v543
      %545 = vst.msk [vmem:[%s204 + $0x30] sm:$0xff] %vm257, %v544
      %v546 = vld [vmem:[#allocation2 + $0x38] sm:$0xff]
      %v547 = vmul.f32 %v546, %v544
      %v548 = vld [vmem:[#allocation3 + $0x38] sm:$0xff]
      %v549 = vadd.f32 %v547, %v548
      %550 = vst.msk [vmem:[%s204 + $0x38] sm:$0xff] %vm257, %v549
      %v551 = vld [vmem:[%s204] sm:$0xff]
      %v552 = vld [vmem:[%s204 + $0x8] sm:$0xff]
      %v553 = vld [vmem:[%s204 + $0x10] sm:$0xff]
      %v554 = vld [vmem:[%s204 + $0x18] sm:$0xff]
      %v555 = vld [vmem:[%s204 + $0x20] sm:$0xff]
      %v556 = vld [vmem:[%s204 + $0x28] sm:$0xff]
      %v557 = vld [vmem:[%s204 + $0x30] sm:$0xff]
      %v558 = vld [vmem:[%s204 + $0x38] sm:$0xff]
      %559 = vrot.lane.b32.xlu0 %v368, 64
      %v560 = vpop.permute.xlu0 %559
      %561 = vrot.lane.b32.xlu0 %v370, 64
      %v562 = vpop.permute.xlu0 %561
      %563 = vrot.lane.b32.xlu0 %v372, 64
      %v564 = vpop.permute.xlu0 %563
      %565 = vrot.lane.b32.xlu0 %v374, 64
      %v566 = vpop.permute.xlu0 %565
      %567 = vrot.lane.b32.xlu0 %v376, 64
      %v568 = vpop.permute.xlu0 %567
      %569 = vrot.lane.b32.xlu0 %v378, 64
      %v570 = vpop.permute.xlu0 %569
      %571 = vrot.lane.b32.xlu0 %v380, 64
      %v572 = vpop.permute.xlu0 %571
      %573 = vrot.lane.b32.xlu0 %v382, 64
      %v574 = vpop.permute.xlu0 %573
      %v583 = vmul.f32 %v551, %v560
      %v584 = vmul.f32 %v552, %v562
      %v585 = vmul.f32 %v553, %v564
      %v586 = vmul.f32 %v554, %v566
      %v587 = vmul.f32 %v555, %v568
      %v588 = vmul.f32 %v556, %v570
      %v589 = vmul.f32 %v557, %v572
      %v590 = vmul.f32 %v558, %v574
      %591 = vst.msk [vmem:[%s204] sm:$0xff] %vm257, %v583
      %592 = vst.msk [vmem:[%s204 + $0x8] sm:$0xff] %vm257, %v584
      %593 = vst.msk [vmem:[%s204 + $0x10] sm:$0xff] %vm257, %v585
      %594 = vst.msk [vmem:[%s204 + $0x18] sm:$0xff] %vm257, %v586
      %595 = vst.msk [vmem:[%s204 + $0x20] sm:$0xff] %vm257, %v587
      %596 = vst.msk [vmem:[%s204 + $0x28] sm:$0xff] %vm257, %v588
      %597 = vst.msk [vmem:[%s204 + $0x30] sm:$0xff] %vm257, %v589
      %598 = vst.msk [vmem:[%s204 + $0x38] sm:$0xff] %vm257, %v590
      %p599 = scmp.lt.s32.totalorder %s14, 1
      %s600 = scalar_select %p599, %s14, 1
      %s601 = smul.addr %s600, 8
      %s602 = smul.addr %s601, 8
      %s603 = scalar_lea.vmem %s3, %s602
      // Predicated region
      $region33: #{tpu_custom_call.1} parent=31 // pred_check
        %p604 = pneg %p110
      $region34: #{tpu_custom_call.1} parent=31 // pred_check_branch
        %606 = sbr.rel (%p604) target = $region36
      $region35: #{tpu_custom_call.1} parent=31 // pred_region
        _
      $region36: #{tpu_custom_call.1} parent=31 // pred_fallthru
        _
    $region32: #{tpu_custom_call.1} parent=5 // pred_fallthru
      _
    %p607 = scmp.le.s32.totalorder 2, %s9
    // Predicated region
    $region37: #{tpu_custom_call.1} parent=5 // pred_check
      %p608 = pneg %p607
    $region38: #{tpu_custom_call.1} parent=5 // pred_check_branch
      %610 = sbr.rel (%p608) target = $region40
    $region39: #{tpu_custom_call.1} parent=5 // pred_region
      %s611 = ssub.s32 %s9, 2
      // Predicated region
      $region41: #{tpu_custom_call.1} parent=39 // pred_check
        %p612 = pneg %p116
      $region42: #{tpu_custom_call.1} parent=39 // pred_check_branch
        %614 = sbr.rel (%p612) target = $region44
      $region43: #{tpu_custom_call.1} parent=39 // pred_region
        %p615 = scmp.lt.s32.totalorder %s15, 1
        %s616 = scalar_select %p615, %s15, 1
        %s617 = smul.addr %s616, 8
        %s618 = smul.addr %s617, 8
        %s619 = scalar_lea.vmem %s3, %s618
      $region44: #{tpu_custom_call.1} parent=39 // pred_fallthru
        _
    $region40: #{tpu_custom_call.1} parent=5 // pred_fallthru
      _
  $region6: #{tpu_custom_call.1} parent=0 // loop_footer
    %s13 = sadd.s32 1, %s9
  $region7: #{tpu_custom_call.1} parent=0 // loop_footer_branch
    %8 = sbr.rel target = $region3
  $region8: #{tpu_custom_call.1} parent=0 // loop_exit
    _

</llo_original>
